<compile_context>
chip_gen: v7x
topology: tpu7x:2x2x1
jax: 0.10.0
libtpu: 0.0.40
codegen_flags: <defaults>
</compile_context>

<pallas_src>
import functools

import numpy as np
import jax
import jax.numpy as jnp
from jax import lax
from jax.experimental import pallas as pl
from jax.experimental.pallas import tpu as pltpu

_LANE = 1024                       # lane-dense last dim (multiple of 128)
_LANE_SHIFT = 10                   # log2(_LANE)
_GOLDEN_I32 = -1640531527          # 0x9E3779B9 as int32 (seed folding)
_MIX1 = 0x9E3779B1                 # odd 32-bit mixing constants
_MIX2 = 0x85EBCA6B
_TARGET_BLOCK_BYTES = 4 * 1024 * 1024    # ~4 MiB/block (f32: 1024 rows, bf16: 2048)
_VMEM_LIMIT_BYTES = 48 * 1024 * 1024     # 2x(in+out) 4 MiB blocks = 16 MiB << 48 MiB


def _round_up(a, b):
    return ((a + b - 1) // b) * b


def _mix_u32(h):
    """Cheap 2-round multiply/xorshift mixer on uint32 (VALU-light)."""
    h = h * jnp.uint32(_MIX1)
    h = h ^ (h >> 16)
    h = h * jnp.uint32(_MIX2)
    h = h ^ (h >> 13)
    return h


def _vardrop_kernel(seed_ref, x_ref, o_ref, *, thr, scale):
    block_rows, lane = x_ref.shape
    # Scalar-unit work: fold tile offset and seed into a single base value.
    base = (pl.program_id(0) * jnp.int32(block_rows * lane)
            + seed_ref[0] * jnp.int32(_GOLDEN_I32))
    # Absolute flat index of every element in this tile (shift, not vector mul).
    r = lax.broadcasted_iota(jnp.int32, (block_rows, lane), 0)
    c = lax.broadcasted_iota(jnp.int32, (block_rows, lane), 1)
    idx = ((r << _LANE_SHIFT) | c) + base
    # Counter-based hash: deterministic per (seed, flat index), tile-invariant.
    keep = _mix_u32(pltpu.bitcast(idx, jnp.uint32)) < jnp.uint32(thr)
    xv = x_ref[...]
    scaled = xv * jnp.asarray(scale, dtype=xv.dtype)   # inverted-dropout scale, native dtype
    o_ref[...] = jnp.where(keep, scaled, jnp.zeros_like(scaled))


def _pick_block_rows(rows, itemsize):
    """Byte-sized block (~4 MiB), multiple of 8 rows, grid >= 2 when possible."""
    target = max(8, _TARGET_BLOCK_BYTES // (_LANE * itemsize))
    target = (target // 8) * 8
    if rows > target:
        return target
    if rows >= 16:
        # Tensor fits one block: still split in two so v7x's two TensorCores
        # (dimension_semantics="parallel") both get work.
        return _round_up((rows + 1) // 2, 8)
    return rows                       # block dim == full array dim is allowed


def _pallas_dropout_slab(x2, seed_arr, thr, scale):
    rows, lane = x2.shape
    block_rows = _pick_block_rows(rows, x2.dtype.itemsize)
    grid_len = pl.cdiv(rows, block_rows)        # partial last block is masked by Pallas
    kernel = functools.partial(_vardrop_kernel, thr=thr, scale=scale)
    n_bytes = x2.size * x2.dtype.itemsize
    return pl.pallas_call(
        kernel,
        out_shape=jax.ShapeDtypeStruct((rows, lane), x2.dtype),
        grid=(grid_len,),
        in_specs=[
            pl.BlockSpec(memory_space=pltpu.MemorySpace.SMEM),      # seed scalar
            pl.BlockSpec((block_rows, lane), lambda i: (i, 0)),     # x tile
        ],
        out_specs=pl.BlockSpec((block_rows, lane), lambda i: (i, 0)),
        compiler_params=pltpu.CompilerParams(
            dimension_semantics=("parallel",),
            vmem_limit_bytes=_VMEM_LIMIT_BYTES),
        cost_estimate=pl.CostEstimate(
            flops=10 * x2.size, transcendentals=0, bytes_accessed=2 * n_bytes),
    )(seed_arr, x2)


def _vardrop_forward(x, seed_arr, dropout):
    orig_shape = x.shape
    n = x.size
    if n == 0:
        return x
    if n >= 2 ** 31:
        raise NotImplementedError(
            "flat index is int32; tensors with >= 2**31 elements are not supported")

    keep_prob = 1.0 - float(dropout)
    thr = min(max(int(round(keep_prob * 2.0 ** 32)), 0), 2 ** 32 - 1)
    scale = 1.0 / keep_prob

    flat = x.reshape(-1)                      # defines the flat element order (free)
    prefix_n = (n // _LANE) * _LANE           # LANE-divisible prefix -> Pallas kernel
    outs = []
    if prefix_n:
        rows = prefix_n // _LANE
        x2 = (flat if prefix_n == n else flat[:prefix_n]).reshape(rows, _LANE)
        out_prefix = _pallas_dropout_slab(x2, seed_arr, thr, scale).reshape(-1)
        if prefix_n == n:
            return out_prefix.reshape(orig_shape)   # fast path: no pad, no slice
        outs.append(out_prefix)
    # Ragged tail (< _LANE elements): identical hash in plain jnp — negligible
    # work, avoids materializing a padded copy of the whole tensor in HBM.
    idx = jnp.arange(prefix_n, n, dtype=jnp.int32)
    v = idx + seed_arr[0] * jnp.int32(_GOLDEN_I32)
    keep = _mix_u32(lax.bitcast_convert_type(v, jnp.uint32)) < jnp.uint32(thr)
    tail = flat[prefix_n:]
    tail_scaled = tail * jnp.asarray(scale, dtype=tail.dtype)
    outs.append(jnp.where(keep, tail_scaled, jnp.zeros_like(tail_scaled)))
    out_flat = outs[0] if len(outs) == 1 else jnp.concatenate(outs)
    return out_flat.reshape(orig_shape)


@functools.partial(jax.custom_vjp, nondiff_argnums=(2,))
def _vardrop_train(x, seed_arr, dropout):
    return _vardrop_forward(x, seed_arr, dropout)


def _vardrop_train_fwd(x, seed_arr, dropout):
    return _vardrop_forward(x, seed_arr, dropout), seed_arr


def _vardrop_train_bwd(dropout, seed_arr, g):
    # d/dx (mask * scale * x) = mask * scale: reuse the same kernel on the cotangent.
    dx = _vardrop_forward(g, seed_arr, dropout)
    dseed = np.zeros(seed_arr.shape, dtype=jax.dtypes.float0)
    return (dx, dseed)


_vardrop_train.defvjp(_vardrop_train_fwd, _vardrop_train_bwd)


def variational_hid_dropout2d(x, *, dropout, seed, training=True):
    """JAX/Pallas equivalent of VariationalHidDropout2d.forward.

    x: (B, C, H, W) array (any floating dtype).  Returns same shape/dtype.
    The mask is a pure function of (seed, flat element index): the same seed
    reproduces the same mask on every call (the "variational" property).
    `seed` may be a Python int or a traced int32 scalar.
    """
    # TODO(synk): the PyTorch module caches self.mask as Python state across
    # calls; reproduced statelessly here by threading the same `seed`.
    if (not training) or dropout == 0.0:
        return x
    if isinstance(seed, int):
        seed = ((seed & 0xFFFFFFFF) ^ 0x80000000) - 0x80000000   # wrap into int32
    seed_arr = jnp.asarray(seed, dtype=jnp.int32).reshape((1,))
    return _vardrop_train(x, seed_arr, float(dropout))


def _reference_forward(x, seed, dropout):
    """Pure-jnp mirror of the kernel's mask (same hash) — testing only."""
    keep_prob = 1.0 - float(dropout)
    thr = min(max(int(round(keep_prob * 2.0 ** 32)), 0), 2 ** 32 - 1)
    s = jnp.asarray(((int(seed) & 0xFFFFFFFF) ^ 0x80000000) - 0x80000000,
                    dtype=jnp.int32)
    idx = jnp.arange(x.size, dtype=jnp.int32)
    v = idx + s * jnp.int32(_GOLDEN_I32)
    keep = _mix_u32(lax.bitcast_convert_type(v, jnp.uint32)) < jnp.uint32(thr)
    flat = x.reshape(-1)
    scaled = flat * jnp.asarray(1.0 / keep_prob, dtype=flat.dtype)
    return jnp.where(keep, scaled, jnp.zeros_like(scaled)).reshape(x.shape)


if __name__ == "__main__":
    key = jax.random.PRNGKey(0)
    B, C, H, W = 2, 4, 16, 16
    x = jax.random.normal(key, (B, C, H, W), dtype=jnp.float32)

    dropout = 0.25
    seed = 1234

    # Training path (mask applied), fast zero-copy path (2048 % 1024 == 0).
    y = jax.block_until_ready(
        variational_hid_dropout2d(x, dropout=dropout, seed=seed, training=True))
    y2 = variational_hid_dropout2d(x, dropout=dropout, seed=seed, training=True)
    assert y.shape == x.shape and y.dtype == x.dtype
    # "Variational" property: same seed -> identical mask -> identical output.
    assert bool(jnp.all(y == y2))

    # Every output element is either 0 (dropped) or x / (1 - p) (kept & rescaled).
    scaled = x * jnp.float32(1.0 / (1.0 - dropout))
    is_zero = (y == 0)
    is_kept = jnp.isclose(y, scaled, rtol=1e-5, atol=1e-6)
    assert bool(jnp.all(jnp.logical_or(is_zero, is_kept)))
    keep_frac = float(jnp.mean(is_kept.astype(jnp.float32)))
    assert 0.6 < keep_frac < 0.9, keep_frac          # ~= 1 - p

    # Kernel hash matches the pure-jnp reference formula exactly.
    y_ref = _reference_forward(x, seed, dropout)
    assert bool(jnp.all((y == 0) == (y_ref == 0)))
    assert bool(jnp.allclose(y, y_ref, rtol=1e-6, atol=0))

    # custom_vjp: gradient is mask * scale (forward applied to a ones cotangent).
    g = jax.grad(lambda t: jnp.sum(
        variational_hid_dropout2d(t, dropout=dropout, seed=seed, training=True)))(x)
    g_expected = variational_hid_dropout2d(
        jnp.ones_like(x), dropout=dropout, seed=seed, training=True)
    assert bool(jnp.allclose(g, g_expected))

    # Eval / dropout==0 paths are the identity.
    y_eval = variational_hid_dropout2d(x, dropout=dropout, seed=seed, training=False)
    assert bool(jnp.all(y_eval == x))
    y_p0 = variational_hid_dropout2d(x, dropout=0.0, seed=seed, training=True)
    assert bool(jnp.all(y_p0 == x))

    # Ragged size > 1024: exercises kernel prefix + jnp tail + concat path.
    x_r = jax.random.normal(jax.random.PRNGKey(1), (2, 4, 17, 17), dtype=jnp.float32)
    y_r = jax.block_until_ready(
        variational_hid_dropout2d(x_r, dropout=0.5, seed=7, training=True))
    y_r_ref = _reference_forward(x_r, 7, 0.5)
    assert y_r.shape == x_r.shape and y_r.dtype == x_r.dtype
    assert bool(jnp.all((y_r == 0) == (y_r_ref == 0)))
    assert bool(jnp.allclose(y_r, y_r_ref, rtol=1e-6, atol=0))

    # Small ragged size (< 1024, tail-only path) + native bf16 kernel path.
    x_odd = jax.random.normal(jax.random.PRNGKey(2), (2, 4, 7, 7), dtype=jnp.bfloat16)
    y_odd = jax.block_until_ready(
        variational_hid_dropout2d(x_odd, dropout=0.5, seed=11, training=True))
    assert y_odd.shape == x_odd.shape and y_odd.dtype == x_odd.dtype
    x_bf = jax.random.normal(jax.random.PRNGKey(3), (2, 4, 16, 16), dtype=jnp.bfloat16)
    y_bf = jax.block_until_ready(
        variational_hid_dropout2d(x_bf, dropout=0.5, seed=13, training=True))
    assert y_bf.shape == x_bf.shape and y_bf.dtype == x_bf.dtype

    print("KERNEL_OK")
</pallas_src>

<mosaic_0001>
module attributes {stable_mosaic.version = 11 : i64} {
  func.func @_vardrop_kernel(%arg0: i32, %arg1: memref<1xi32, #tpu.memory_space<smem>>, %arg2: memref<2x1024xf32, #tpu.memory_space<vmem>>, %arg3: memref<2x1024xf32, #tpu.memory_space<vmem>>) attributes {dimension_semantics = [#tpu.dimension_semantics<parallel>], iteration_bounds = array<i64: 1>, scalar_prefetch = 0 : i64, scratch_operands = 0 : i64, tpu.core_type = #tpu.core_type<tc>, window_params = [{transform_indices = @transform_0, window_bounds = array<i64: 1>}, {transform_indices = @transform_1, window_bounds = array<i64: 2, 1024>}, {transform_indices = @transform_2, window_bounds = array<i64: 2, 1024>}]} {
    %c2048_i32 = arith.constant 2048 : i32
    %0 = arith.muli %arg0, %c2048_i32 : i32
    %c0 = arith.constant 0 : index
    %1 = memref.load %arg1[%c0] : memref<1xi32, #tpu.memory_space<smem>>
    %c-1640531527_i32 = arith.constant -1640531527 : i32
    %2 = arith.muli %1, %c-1640531527_i32 : i32
    %3 = arith.addi %0, %2 : i32
    %4 = tpu.iota {dimensions = array<i32: 0>} : vector<2x1024xi32>
    %5 = tpu.iota {dimensions = array<i32: 1>} : vector<2x1024xi32>
    %c10_i32 = arith.constant 10 : i32
    %6 = vector.broadcast %c10_i32 : i32 to vector<2x1024xi32>
    %7 = arith.shli %4, %6 : vector<2x1024xi32>
    %8 = arith.ori %7, %5 : vector<2x1024xi32>
    %9 = vector.broadcast %3 : i32 to vector<2x1024xi32>
    %10 = arith.addi %8, %9 : vector<2x1024xi32>
    %11 = tpu.bitcast %10 : vector<2x1024xi32> -> vector<2x1024xi32>
    %c-1640531535_i32 = arith.constant -1640531535 : i32
    %12 = vector.broadcast %c-1640531535_i32 : i32 to vector<2x1024xi32>
    %13 = arith.muli %11, %12 : vector<2x1024xi32>
    %c16_i32 = arith.constant 16 : i32
    %14 = vector.broadcast %c16_i32 : i32 to vector<2x1024xi32>
    %15 = arith.shrui %13, %14 : vector<2x1024xi32>
    %16 = arith.xori %13, %15 : vector<2x1024xi32>
    %c-2048144789_i32 = arith.constant -2048144789 : i32
    %17 = vector.broadcast %c-2048144789_i32 : i32 to vector<2x1024xi32>
    %18 = arith.muli %16, %17 : vector<2x1024xi32>
    %c13_i32 = arith.constant 13 : i32
    %19 = vector.broadcast %c13_i32 : i32 to vector<2x1024xi32>
    %20 = arith.shrui %18, %19 : vector<2x1024xi32>
    %21 = arith.xori %18, %20 : vector<2x1024xi32>
    %c-1073741824_i32 = arith.constant -1073741824 : i32
    %22 = vector.broadcast %c-1073741824_i32 : i32 to vector<2x1024xi32>
    %23 = arith.cmpi ult, %21, %22 : vector<2x1024xi32>
    %c0_0 = arith.constant 0 : index
    %c0_1 = arith.constant 0 : index
    %24 = vector.load %arg2[%c0_0, %c0_1] : memref<2x1024xf32, #tpu.memory_space<vmem>>, vector<2x1024xf32>
    %cst = arith.constant 1.33333337 : f32
    %25 = vector.broadcast %cst : f32 to vector<2x1024xf32>
    %26 = arith.mulf %24, %25 : vector<2x1024xf32>
    %cst_2 = arith.constant 0.000000e+00 : f32
    %27 = vector.broadcast %cst_2 : f32 to vector<2x1024xf32>
    %28 = arith.select %23, %26, %27 : vector<2x1024xi1>, vector<2x1024xf32>
    %c0_3 = arith.constant 0 : index
    %c0_4 = arith.constant 0 : index
    %29 = vector.load %arg3[%c0_3, %c0_4] : memref<2x1024xf32, #tpu.memory_space<vmem>>, vector<2x1024xf32>
    tpu.vector_store %arg3[%c0_3, %c0_4], %28 {strides = array<i32>} : memref<2x1024xf32, #tpu.memory_space<vmem>>, vector<2x1024xf32>,
    return
  }
  func.func @transform_0(%arg0: i32) -> i32 {
    %c0_i32 = arith.constant 0 : i32
    %c0_i32_0 = arith.constant 0 : i32
    return %c0_i32 : i32
  }
  func.func @transform_1(%arg0: i32) -> (i32, i32) {
    %c0_i32 = arith.constant 0 : i32
    %c0_i32_0 = arith.constant 0 : i32
    return %arg0, %c0_i32 : i32, i32
  }
  func.func @transform_2(%arg0: i32) -> (i32, i32) {
    %c0_i32 = arith.constant 0 : i32
    %c0_i32_0 = arith.constant 0 : i32
    return %arg0, %c0_i32 : i32, i32
  }
}

</mosaic_0001>

<llo_original>
// kernel: tpu_custom_call.1
$region0: #{tpu_custom_call.1}
  #allocation0 [shape = 'u32[]', space=smem, size = 0x4, offset = 0x4, fixed_abs, tag = 'smem constant byte address 0x4 - core index']
  #allocation1 [shape = 'u32[144,128]{1,0:T(1,128)}', space=vmem, size = 0x12000, scoped, tag = 'internal scratch']
  #allocation2 [shape = 's32[1]{0:T(128)S(6)}', space=smem, size = 0x200, scoped, tag = 'scoped memory for tpu_custom_call.1']
  %s0 = inlined_call_operand.<no memory space> [shape: s32[1], index: 0, kind: input, shape index: {}]
  %s1 = inlined_call_operand.hbm [shape: f32[2,1024], index: 1, kind: input, shape index: {}]
  %s2 = inlined_call_operand.hbm [shape: f32[2,1024], index: 2, kind: output, shape index: {}]
  %s3 = sld [smem:[#allocation0]]
  $region22: #{tpu_custom_call.1} parent=0
    _
  %s5 = ssub.s32 1, %s3
  %s6 = scalar_select 0, %s5, %s3
  %7 = sst [smem:[#allocation2]] %s0
  $region1: #{tpu_custom_call.1} parent=0
    #allocation3 [shape = 'u8[8192]{0}', space=vmem, size = 0x2000, scoped, tag = 'input window, operand 1, single buffered']
    #allocation4 [shape = 's32[1]{0}', space=sflag, size = 0x4, scoped, tag = 'scoped memory for tpu_custom_call.1']
    #allocation5 [shape = 's32[1]{0}', space=sflag, size = 0x4, scoped, tag = 'scoped memory for tpu_custom_call.1']
    #allocation6 [shape = 'u8[8192]{0}', space=vmem, size = 0x2000, scoped, tag = 'output window, operand 0, single buffered']
    %8 = vsyncpa [#allocation4], 0
    %9 = vsyncpa [#allocation5], 0
    // Predicated region
    $region2: #{tpu_custom_call.1} parent=1 // pred_check
      _
    $region3: #{tpu_custom_call.1} parent=1 // pred_check_branch
      %11 = sbr.rel (0) target = $region5
    $region4: #{tpu_custom_call.1} parent=1 // pred_region
      _
    $region5: #{tpu_custom_call.1} parent=1 // pred_fallthru
      _
    // Predicated region
    $region6: #{tpu_custom_call.1} parent=1 // pred_check
      _
    $region7: #{tpu_custom_call.1} parent=1 // pred_check_branch
      %13 = sbr.rel (0) target = $region9
    $region8: #{tpu_custom_call.1} parent=1 // pred_region
      %s15 = ssub.s32 256, 256
      %16 = vsyncadd [#allocation4], %s15
      %s18 = sshll.u32 [#allocation3], 4
      %s19 = int_to_ptr.vmem [resolvable:$true] %s18
      %21 = dma.hbm_to_vmem [thread:$0]  %s1, 256, %s19, [#allocation4]
    $region9: #{tpu_custom_call.1} parent=1 // pred_fallthru
      _
    // Predicated region
    $region10: #{tpu_custom_call.1} parent=1 // pred_check
      _
    $region11: #{tpu_custom_call.1} parent=1 // pred_check_branch
      %23 = sbr.rel (0) target = $region13
    $region12: #{tpu_custom_call.1} parent=1 // pred_region
      %24 = dma.done [#allocation4], 256
    $region13: #{tpu_custom_call.1} parent=1 // pred_fallthru
      _
    %s25 = smul.u32 0, 2048
    %s26 = sld [smem:[#allocation2]]
    %s27 = smul.u32 %s26, 2654435769
    %s28 = sadd.s32 %s25, %s27
    %v29 = vlaneseq
    %v30 = vshrl.u32 %v29, 7
    %v31 = vlaneseq
    %v32 = vand.u32 %v31, 127
    %v33 = vadd.s32 %v32, 128
    %v34 = vadd.s32 %v32, 256
    %v35 = vadd.s32 %v32, 384
    %v36 = vadd.s32 %v32, 512
    %v37 = vadd.s32 %v32, 640
    %v38 = vadd.s32 %v32, 768
    %v39 = vadd.s32 %v32, 896
    %v40 = vshll.u32 %v30, 10
    %v41 = vor.u32 %v40, %v32
    %v42 = vor.u32 %v40, %v33
    %v43 = vor.u32 %v40, %v34
    %v44 = vor.u32 %v40, %v35
    %v45 = vor.u32 %v40, %v36
    %v46 = vor.u32 %v40, %v37
    %v47 = vor.u32 %v40, %v38
    %v48 = vor.u32 %v40, %v39
    %v49 = vstv %s28
    %v50 = vadd.s32 %v41, %v49
    %v51 = vadd.s32 %v42, %v49
    %v52 = vadd.s32 %v43, %v49
    %v53 = vadd.s32 %v44, %v49
    %v54 = vadd.s32 %v45, %v49
    %v55 = vadd.s32 %v46, %v49
    %v56 = vadd.s32 %v47, %v49
    %v57 = vadd.s32 %v48, %v49
    %v58 = vmul.u32 %v50, 2654435761
    %v59 = vmul.u32 %v51, 2654435761
    %v60 = vmul.u32 %v52, 2654435761
    %v61 = vmul.u32 %v53, 2654435761
    %v62 = vmul.u32 %v54, 2654435761
    %v63 = vmul.u32 %v55, 2654435761
    %v64 = vmul.u32 %v56, 2654435761
    %v65 = vmul.u32 %v57, 2654435761
    %v66 = vshrl.u32 %v58, 16
    %v67 = vshrl.u32 %v59, 16
    %v68 = vshrl.u32 %v60, 16
    %v69 = vshrl.u32 %v61, 16
    %v70 = vshrl.u32 %v62, 16
    %v71 = vshrl.u32 %v63, 16
    %v72 = vshrl.u32 %v64, 16
    %v73 = vshrl.u32 %v65, 16
    %v74 = vxor.u32 %v58, %v66
    %v75 = vxor.u32 %v59, %v67
    %v76 = vxor.u32 %v60, %v68
    %v77 = vxor.u32 %v61, %v69
    %v78 = vxor.u32 %v62, %v70
    %v79 = vxor.u32 %v63, %v71
    %v80 = vxor.u32 %v64, %v72
    %v81 = vxor.u32 %v65, %v73
    %v82 = vmul.u32 %v74, 2246822507
    %v83 = vmul.u32 %v75, 2246822507
    %v84 = vmul.u32 %v76, 2246822507
    %v85 = vmul.u32 %v77, 2246822507
    %v86 = vmul.u32 %v78, 2246822507
    %v87 = vmul.u32 %v79, 2246822507
    %v88 = vmul.u32 %v80, 2246822507
    %v89 = vmul.u32 %v81, 2246822507
    %v90 = vshrl.u32 %v82, 13
    %v91 = vshrl.u32 %v83, 13
    %v92 = vshrl.u32 %v84, 13
    %v93 = vshrl.u32 %v85, 13
    %v94 = vshrl.u32 %v86, 13
    %v95 = vshrl.u32 %v87, 13
    %v96 = vshrl.u32 %v88, 13
    %v97 = vshrl.u32 %v89, 13
    %v98 = vxor.u32 %v82, %v90
    %v99 = vxor.u32 %v83, %v91
    %v100 = vxor.u32 %v84, %v92
    %v101 = vxor.u32 %v85, %v93
    %v102 = vxor.u32 %v86, %v94
    %v103 = vxor.u32 %v87, %v95
    %v104 = vxor.u32 %v88, %v96
    %v105 = vxor.u32 %v89, %v97
    %vm106 = vcmp.lt.u32.totalorder %v98, 3221225472
    %vm107 = vcmp.lt.u32.totalorder %v99, 3221225472
    %vm108 = vcmp.lt.u32.totalorder %v100, 3221225472
    %vm109 = vcmp.lt.u32.totalorder %v101, 3221225472
    %vm110 = vcmp.lt.u32.totalorder %v102, 3221225472
    %vm111 = vcmp.lt.u32.totalorder %v103, 3221225472
    %vm112 = vcmp.lt.u32.totalorder %v104, 3221225472
    %vm113 = vcmp.lt.u32.totalorder %v105, 3221225472
    %v114 = vld [vmem:[#allocation3] sm:$0xff]
    %v115 = vld [vmem:[#allocation3 + $0x8] sm:$0xff]
    %v116 = vmul.f32 %v114, 1.3333334
    %v117 = vmul.f32 %v115, 1.3333334
    %v120 = vcombine.high %v116, %v116
    %v122 = vunpack.c.l.s4 1983009808
    %v123 = vunpack.c.0.s8 %v122
    %v124 = vlaneseq
    %v125 = vshrl.u32 %v124, 7
    %v126 = vsub.s32 %v123, %v125
    %v127 = vrot.slane %v116, %v126
    %v129 = vunpack.c.l.s4 1983009808
    %v130 = vunpack.c.0.s8 %v129
    %v131 = vlaneseq
    %v132 = vshrl.u32 %v131, 7
    %v133 = vsub.s32 %v130, %v132
    %v134 = vrot.slane %v120, %v133
    %v135 = vcombine.high %v127, %v127
    %v136 = vcombine.high %v134, %v134
    %v137 = vcombine.high %v117, %v117
    %v139 = vunpack.c.l.s4 1983009808
    %v140 = vunpack.c.0.s8 %v139
    %v141 = vlaneseq
    %v142 = vshrl.u32 %v141, 7
    %v143 = vsub.s32 %v140, %v142
    %v144 = vrot.slane %v117, %v143
    %v146 = vunpack.c.l.s4 1983009808
    %v147 = vunpack.c.0.s8 %v146
    %v148 = vlaneseq
    %v149 = vshrl.u32 %v148, 7
    %v150 = vsub.s32 %v147, %v149
    %v151 = vrot.slane %v137, %v150
    %v152 = vcombine.high %v144, %v144
    %v153 = vcombine.high %v151, %v151
    %v162 = vsel %vm106, %v127, 0.0
    %v163 = vsel %vm107, %v135, 0.0
    %v164 = vsel %vm108, %v134, 0.0
    %v165 = vsel %vm109, %v136, 0.0
    %v166 = vsel %vm110, %v144, 0.0
    %v167 = vsel %vm111, %v152, 0.0
    %v168 = vsel %vm112, %v151, 0.0
    %v169 = vsel %vm113, %v153, 0.0
    %v178 = vcombine.low %v162, %v163
    %v179 = vcombine.low %v164, %v165
    %v181 = vunpack.c.l.s4 1983009808
    %v182 = vunpack.c.0.s8 %v181
    %v183 = vlaneseq
    %v184 = vshrl.u32 %v183, 7
    %v185 = vsub.s32 %v182, %v184
    %v186 = vrot.slane %v178, %v185
    %v188 = vunpack.c.l.s4 1983009808
    %v189 = vunpack.c.0.s8 %v188
    %v190 = vlaneseq
    %v191 = vshrl.u32 %v190, 7
    %v192 = vsub.s32 %v189, %v191
    %v193 = vrot.slane %v179, %v192
    %v194 = vcombine.low %v186, %v193
    %v195 = vcombine.low %v166, %v167
    %v196 = vcombine.low %v168, %v169
    %v198 = vunpack.c.l.s4 1983009808
    %v199 = vunpack.c.0.s8 %v198
    %v200 = vlaneseq
    %v201 = vshrl.u32 %v200, 7
    %v202 = vsub.s32 %v199, %v201
    %v203 = vrot.slane %v195, %v202
    %v205 = vunpack.c.l.s4 1983009808
    %v206 = vunpack.c.0.s8 %v205
    %v207 = vlaneseq
    %v208 = vshrl.u32 %v207, 7
    %v209 = vsub.s32 %v206, %v208
    %v210 = vrot.slane %v196, %v209
    %v211 = vcombine.low %v203, %v210
    %214 = vst [vmem:[#allocation6] sm:$0xff] %v194
    %215 = vst [vmem:[#allocation6 + $0x8] sm:$0xff] %v211
    // Predicated region
    $region14: #{tpu_custom_call.1} parent=1 // pred_check
      _
    $region15: #{tpu_custom_call.1} parent=1 // pred_check_branch
      %217 = sbr.rel (0) target = $region17
    $region16: #{tpu_custom_call.1} parent=1 // pred_region
      %s219 = ssub.s32 256, 256
      %220 = vsyncadd [#allocation5], %s219
      %s222 = sshll.u32 [#allocation6], 4
      %s223 = int_to_ptr.vmem [resolvable:$true] %s222
      %225 = dma.vmem_to_hbm [thread:$0]  %s223, 256, %s2, [#allocation5]
    $region17: #{tpu_custom_call.1} parent=1 // pred_fallthru
      _
    // Predicated region
    $region18: #{tpu_custom_call.1} parent=1 // pred_check
      _
    $region19: #{tpu_custom_call.1} parent=1 // pred_check_branch
      %227 = sbr.rel (0) target = $region21
    $region20: #{tpu_custom_call.1} parent=1 // pred_region
      %228 = dma.done [#allocation5], 256
    $region21: #{tpu_custom_call.1} parent=1 // pred_fallthru
      _
    %229 = vsyncpa [#allocation4], 1
    %230 = vsyncpa [#allocation5], 1

</llo_original>
